<compile_context>
chip_gen: v5e
topology: v5e:2x2
jax: 0.10.0
libtpu: 0.0.40
codegen_flags: <defaults>
</compile_context>

<pallas_src>
import functools

import jax
import jax.numpy as jnp
from jax.experimental import pallas as pl
from jax.experimental.pallas import tpu as pltpu


def _round_up(x, m):
    return (x + m - 1) // m * m


def _choose_tm(m):
    """Tile size along M: big for big M, >= 2 tiles whenever M >= 16 (v7x)."""
    if m >= 1024:
        return 512
    if m >= 16:
        return _round_up((m + 1) // 2, 8)
    return _round_up(m, 8)


def _conv_vmem_bytes(taps, tm, k, n, has_res):
    """Rough double-buffered footprint of one conv pallas_call (+margin)."""
    x_b = taps * tm * k * 2
    w_b = taps * k * n * 2
    o_b = tm * n * 2
    r_b = tm * n * 2 if has_res else 0
    acc = tm * n * 4
    need = 2 * (x_b + w_b + o_b + r_b) + acc + 2 * n * 4 + (1 << 20)
    need = need * 5 // 4
    return int(min(max(need, 24 << 20), 48 << 20))     # v7x has 64 MiB total


# ----------------------------------------------------------------------------
# Pallas kernels
# ----------------------------------------------------------------------------
def _conv_kernel(x_ref, w_ref, b_ref, o_ref, acc_ref, *, relu, taps):
    """One (tm, N) output tile; the full weight is VMEM-resident.

    x_ref: (T, tm, K) bf16, w_ref: (T, K, N) bf16 (resident), b_ref: (1, N) f32.
    Tap/K reduction is a static unrolled loop of MXU dots into f32 scratch.
    """
    acc_ref[...] = jnp.dot(x_ref[0], w_ref[0], preferred_element_type=jnp.float32)
    for t in range(1, taps):
        acc_ref[...] += jnp.dot(x_ref[t], w_ref[t],
                                preferred_element_type=jnp.float32)
    out = acc_ref[...] + b_ref[...]
    if relu:
        out = jnp.maximum(out, 0.0)
    o_ref[...] = out.astype(o_ref.dtype)


def _conv_res_kernel(x_ref, w_ref, b_ref, r_ref, o_ref, acc_ref, *, relu, taps):
    """Same as above, fused residual add in the epilogue."""
    acc_ref[...] = jnp.dot(x_ref[0], w_ref[0], preferred_element_type=jnp.float32)
    for t in range(1, taps):
        acc_ref[...] += jnp.dot(x_ref[t], w_ref[t],
                                preferred_element_type=jnp.float32)
    out = acc_ref[...] + b_ref[...] + r_ref[...].astype(jnp.float32)
    if relu:
        out = jnp.maximum(out, 0.0)
    o_ref[...] = out.astype(o_ref.dtype)


def _maxpool_kernel(x_ref, o_ref):
    # x_ref: (9, tm, C), tap axis first -> plain elementwise max, lane-dense C.
    o_ref[...] = jnp.max(x_ref[...], axis=0)


def _head_kernel(x_ref, w_ref, b_ref, o_ref):
    # x_ref: (B, HW, C) bf16 -> global average pool (f32) -> bf16 MXU matmul.
    x = x_ref[...].astype(jnp.float32)
    feat = jnp.mean(x, axis=1).astype(jnp.bfloat16)
    o_ref[...] = jnp.dot(feat, w_ref[...],
                         preferred_element_type=jnp.float32) + b_ref[...]


# ----------------------------------------------------------------------------
# Conv-as-matmul wrapper (resident weight, grid over M tiles only)
# ----------------------------------------------------------------------------
def _conv_matmul(x_taps, w_taps, bias, relu, residual, out_dtype):
    """x_taps: (T, M, K) bf16, w_taps: (T, K, N) bf16, bias: (1, N) f32."""
    T, M, K = x_taps.shape
    N = w_taps.shape[2]

    tm = _choose_tm(M)
    Mp = _round_up(M, tm)
    if Mp != M:
        x_taps = jnp.pad(x_taps, ((0, 0), (0, Mp - M), (0, 0)))
        if residual is not None:
            residual = jnp.pad(residual, ((0, Mp - M), (0, 0)))

    grid = (Mp // tm,)
    x_spec = pl.BlockSpec((T, tm, K), lambda i: (0, i, 0))
    # Constant index_map => the whole folded weight is DMA'd into VMEM once
    # per pallas_call and stays resident across all M tiles.
    w_spec = pl.BlockSpec((T, K, N), lambda i: (0, 0, 0))
    b_spec = pl.BlockSpec((1, N), lambda i: (0, 0))
    o_spec = pl.BlockSpec((tm, N), lambda i: (i, 0))
    out_shape = jax.ShapeDtypeStruct((Mp, N), out_dtype)
    scratch = [pltpu.VMEM((tm, N), jnp.float32)]
    cparams = pltpu.CompilerParams(
        dimension_semantics=("parallel",),
        vmem_limit_bytes=_conv_vmem_bytes(T, tm, K, N, residual is not None))

    if residual is None:
        kernel = functools.partial(_conv_kernel, relu=relu, taps=T)
        out = pl.pallas_call(
            kernel, grid=grid,
            in_specs=[x_spec, w_spec, b_spec],
            out_specs=o_spec, out_shape=out_shape,
            scratch_shapes=scratch, compiler_params=cparams,
        )(x_taps, w_taps, bias)
    else:
        kernel = functools.partial(_conv_res_kernel, relu=relu, taps=T)
        r_spec = pl.BlockSpec((tm, N), lambda i: (i, 0))
        out = pl.pallas_call(
            kernel, grid=grid,
            in_specs=[x_spec, w_spec, b_spec, r_spec],
            out_specs=o_spec, out_shape=out_shape,
            scratch_shapes=scratch, compiler_params=cparams,
        )(x_taps, w_taps, bias, residual)

    # Keep this slice immediately after the pallas_call (padded rows are junk).
    return out[:M] if Mp != M else out


# ----------------------------------------------------------------------------
# Conv / pool / head glue
# ----------------------------------------------------------------------------
def _extract_taps(x, kh, kw, stride, pad, pad_value=0.0):
    """x: (B, H, W, C) -> (KH*KW, B*Ho*Wo, C), tap axis first (K stays = Cin)."""
    # TODO(synk): taps are still materialized in HBM (9x duplication of the
    # 3x3-conv / maxpool inputs); a shifted-window manual-DMA halo kernel
    # would remove this remaining activation-traffic multiplier.
    B, H, W, C = x.shape
    xp = jnp.pad(x, ((0, 0), (pad, pad), (pad, pad), (0, 0)),
                 constant_values=pad_value)
    Ho = (H + 2 * pad - kh) // stride + 1
    Wo = (W + 2 * pad - kw) // stride + 1
    taps = []
    for i in range(kh):
        for j in range(kw):
            taps.append(xp[:, i:i + stride * (Ho - 1) + 1:stride,
                           j:j + stride * (Wo - 1) + 1:stride, :])
    t = jnp.stack(taps, axis=0)                      # (T, B, Ho, Wo, C)
    return t.reshape(kh * kw, B * Ho * Wo, C), Ho, Wo


def conv_bn(x, p, stride, pad, relu=True, residual=None,
            out_dtype=jnp.bfloat16):
    """Conv2d (bias-free) + folded eval-mode BatchNorm [+ residual] [+ ReLU]."""
    w_taps = p["w"]                                  # (T, K, N) bf16 (padded)
    bias = p["b"]                                    # (1, N) f32
    T, K, N = w_taps.shape
    k = p["ksize"]
    B = x.shape[0]

    if k == 1:
        xs = x[:, ::stride, ::stride, :] if stride > 1 else x
        Ho, Wo = xs.shape[1], xs.shape[2]
        x_taps = xs.reshape(1, B * Ho * Wo, K)
    elif p["fold"]:
        # Stem conv (Cin=3): im2col by channel-axis concatenation (no stack +
        # transpose), K zero-padded to the prepared (lane-dense) width.
        H, W = x.shape[1], x.shape[2]
        xp = jnp.pad(x, ((0, 0), (pad, pad), (pad, pad), (0, 0)))
        Ho = (H + 2 * pad - k) // stride + 1
        Wo = (W + 2 * pad - k) // stride + 1
        cols = [xp[:, i:i + stride * (Ho - 1) + 1:stride,
                   j:j + stride * (Wo - 1) + 1:stride, :]
                for i in range(k) for j in range(k)]
        im = jnp.concatenate(cols, axis=-1)           # (B, Ho, Wo, k*k*cin)
        kraw = im.shape[-1]
        if kraw != K:
            im = jnp.pad(im, ((0, 0), (0, 0), (0, 0), (0, K - kraw)))
        x_taps = im.reshape(1, B * Ho * Wo, K)
    else:
        x_taps, Ho, Wo = _extract_taps(x, k, k, stride, pad)   # (9, M, K)

    res2d = None if residual is None else residual.reshape(-1, N)
    out = _conv_matmul(x_taps, w_taps, bias, relu, res2d, out_dtype)
    return out.reshape(B, Ho, Wo, N)


def maxpool_3x3_s2(x):
    B, H, W, C = x.shape
    taps, Ho, Wo = _extract_taps(x, 3, 3, 2, 1, pad_value=-jnp.inf)
    M = B * Ho * Wo
    tm = _choose_tm(M)
    Mp = _round_up(M, tm)
    if Mp != M:
        taps = jnp.pad(taps, ((0, 0), (0, Mp - M), (0, 0)))
    out = pl.pallas_call(
        _maxpool_kernel,
        grid=(Mp // tm,),
        in_specs=[pl.BlockSpec((9, tm, C), lambda i: (0, i, 0))],
        out_specs=pl.BlockSpec((tm, C), lambda i: (i, 0)),
        out_shape=jax.ShapeDtypeStruct((Mp, C), x.dtype),
        compiler_params=pltpu.CompilerParams(dimension_semantics=("parallel",)),
    )(taps)
    out = out[:M] if Mp != M else out
    return out.reshape(B, Ho, Wo, C)


def _embed_head(x, w_bf16, b_pad, embed_size):
    B, H, W, C = x.shape
    HW = H * W
    x3 = x.reshape(B, HW, C)
    Ep = w_bf16.shape[1]
    need = 2 * (B * HW * C * 2 + C * Ep * 2 + B * Ep * 4) + (2 << 20)
    out = pl.pallas_call(
        _head_kernel,
        grid=(1,),
        in_specs=[pl.BlockSpec((B, HW, C), lambda i: (0, 0, 0)),
                  pl.BlockSpec((C, Ep), lambda i: (0, 0)),
                  pl.BlockSpec((1, Ep), lambda i: (0, 0))],
        out_specs=pl.BlockSpec((B, Ep), lambda i: (0, 0)),
        out_shape=jax.ShapeDtypeStruct((B, Ep), jnp.float32),
        compiler_params=pltpu.CompilerParams(
            dimension_semantics=("arbitrary",),
            vmem_limit_bytes=int(min(max(need, 16 << 20), 48 << 20))),
    )(x3, w_bf16, b_pad)
    return out[:, :embed_size]


# ----------------------------------------------------------------------------
# ResNet-50 structure
# ----------------------------------------------------------------------------
def bottleneck_forward(x, p):
    # TODO(synk): fusing conv1 -> conv2 -> conv3(+residual) of one bottleneck
    # into a single pallas_call (keeping the per-M-tile intermediate in VMEM
    # instead of HBM round-trips) is left as future work.
    out = conv_bn(x, p["conv1"], stride=1, pad=0, relu=True)
    out = conv_bn(out, p["conv2"], stride=p["stride"], pad=1, relu=True)
    if p["downsample"] is not None:
        identity = conv_bn(x, p["downsample"], stride=p["stride"], pad=0,
                           relu=False)
    else:
        identity = x
    # conv3 + bn3 + residual add + relu fused in one Pallas kernel.
    out = conv_bn(out, p["conv3"], stride=1, pad=0, relu=True,
                  residual=identity)
    return out


def encoder_cnn_forward(images, params):
    """images: (B, 3, H, W) NCHW (PyTorch convention) -> (B, embed_size)."""
    x = jnp.transpose(images, (0, 2, 3, 1)).astype(jnp.bfloat16)   # -> NHWC bf16
    x = conv_bn(x, params["conv1"], stride=2, pad=3, relu=True)
    x = maxpool_3x3_s2(x)
    for blocks in params["layers"]:
        for p in blocks:
            x = bottleneck_forward(x, p)
    return _embed_head(x, params["embed_w"], params["embed_b"],
                       params["embed_size"])


# ----------------------------------------------------------------------------
# Parameters: raw (torchvision-shaped) + one-time inference preparation
# ----------------------------------------------------------------------------
def _conv_bn_params(key, cin, cout, k):
    kw_, kg, kb, km, kv = jax.random.split(key, 5)
    return {
        "w": jax.random.normal(kw_, (cout, cin, k, k), jnp.float32) * 0.05,
        "gamma": 1.0 + 0.1 * jax.random.normal(kg, (cout,), jnp.float32),
        "beta": 0.1 * jax.random.normal(kb, (cout,), jnp.float32),
        "mean": 0.1 * jax.random.normal(km, (cout,), jnp.float32),
        "var": 1.0 + 0.1 * jax.random.uniform(kv, (cout,), jnp.float32),
    }


def _bottleneck_params(key, inplanes, planes, stride):
    k1, k2, k3, kd = jax.random.split(key, 4)
    p = {
        "conv1": _conv_bn_params(k1, inplanes, planes, 1),
        "conv2": _conv_bn_params(k2, planes, planes, 3),
        "conv3": _conv_bn_params(k3, planes, planes * 4, 1),
        "stride": stride,
        "downsample": None,
    }
    if stride != 1 or inplanes != planes * 4:
        p["downsample"] = _conv_bn_params(kd, inplanes, planes * 4, 1)
    return p


def init_encoder_params(key, embed_size):
    keys = jax.random.split(key, 8)
    params = {"conv1": _conv_bn_params(keys[0], 3, 64, 7)}
    layer_cfg = [(64, 3, 1), (128, 4, 2), (256, 6, 2), (512, 3, 2)]
    inplanes = 64
    layers = []
    for li, (planes, nblocks, stride) in enumerate(layer_cfg):
        bkeys = jax.random.split(keys[1 + li], nblocks)
        blocks = []
        for bi in range(nblocks):
            s = stride if bi == 0 else 1
            blocks.append(_bottleneck_params(bkeys[bi], inplanes, planes, s))
            inplanes = planes * 4
        layers.append(blocks)
    params["layers"] = layers
    ke_w, ke_b = jax.random.split(keys[5], 2)
    params["embed_w"] = jax.random.normal(ke_w, (embed_size, 2048),
                                          jnp.float32) * 0.02
    params["embed_b"] = 0.01 * jax.random.normal(ke_b, (embed_size,),
                                                 jnp.float32)
    return params


def prepare_params(raw, eps=1e-5):
    """Fold BN, transpose OIHW -> tap-major (T, K, N), pad channels to
    lane-dense multiples of 128 (zeros -> numerically exact), cast to bf16."""
    def fold(p):
        w = p["w"]                                   # (Cout, Cin, KH, KW)
        cout, cin, kh, kw = w.shape
        scale = p["gamma"] / jnp.sqrt(p["var"] + eps)
        wf = w * scale[:, None, None, None]
        bias = p["beta"] - p["mean"] * scale
        if cin < 64:
            # Stem: fold taps into K (tap-major, channel-minor) for one matmul.
            w2 = jnp.transpose(wf, (2, 3, 1, 0)).reshape(kh * kw * cin, cout)
            w_taps = w2[None]                        # (1, 147, 64)
            fold_flag = True
        else:
            w_taps = jnp.transpose(wf, (2, 3, 1, 0)).reshape(kh * kw, cin, cout)
            fold_flag = False
        kdim, ndim = w_taps.shape[1], w_taps.shape[2]
        kp = _round_up(kdim, 128)
        np_ = _round_up(ndim, 128)
        w_taps = jnp.pad(w_taps, ((0, 0), (0, kp - kdim), (0, np_ - ndim)))
        bias = jnp.pad(bias, (0, np_ - ndim))
        return {"w": w_taps.astype(jnp.bfloat16),
                "b": bias.reshape(1, np_).astype(jnp.float32),
                "ksize": kh, "fold": fold_flag}

    out = {"conv1": fold(raw["conv1"])}
    layers = []
    for blocks in raw["layers"]:
        nb = []
        for bp in blocks:
            nb.append({
                "conv1": fold(bp["conv1"]),
                "conv2": fold(bp["conv2"]),
                "conv3": fold(bp["conv3"]),
                "stride": bp["stride"],
                "downsample": None if bp["downsample"] is None
                else fold(bp["downsample"]),
            })
        layers.append(nb)
    out["layers"] = layers

    E = raw["embed_w"].shape[0]
    Ep = _round_up(E, 128)                            # lane-dense head output
    w2d = jnp.transpose(raw["embed_w"])               # (2048, E)
    out["embed_w"] = jnp.pad(w2d, ((0, 0), (0, Ep - E))).astype(jnp.bfloat16)
    out["embed_b"] = jnp.pad(raw["embed_b"], (0, Ep - E)).reshape(1, Ep) \
                        .astype(jnp.float32)
    out["embed_size"] = E
    return out


if __name__ == "__main__":
    key = jax.random.PRNGKey(0)
    kp, kx = jax.random.split(key)
    embed_size = 32
    raw_params = init_encoder_params(kp, embed_size)
    params = prepare_params(raw_params)
    # small NCHW input, as the PyTorch module expects (B, 3, H, W)
    images = jax.random.normal(kx, (2, 3, 16, 16), jnp.float32)
    feats = encoder_cnn_forward(images, params)
    feats = jax.block_until_ready(feats)
    assert feats.shape == (2, embed_size)
    assert bool(jnp.all(jnp.isfinite(feats)))
    print("KERNEL_OK")
</pallas_src>

<mosaic_0001>
module attributes {stable_mosaic.version = 11 : i64} {
  func.func @_conv_kernel(%arg0: i32, %arg1: memref<1x64x256xbf16, #tpu.memory_space<vmem>>, %arg2: memref<1x256x128xbf16, #tpu.memory_space<vmem>>, %arg3: memref<1x128xf32, #tpu.memory_space<vmem>>, %arg4: memref<64x128xbf16, #tpu.memory_space<vmem>>, %arg5: memref<64x128xf32, #tpu.memory_space<vmem>>) attributes {dimension_semantics = [#tpu.dimension_semantics<parallel>], iteration_bounds = array<i64: 2>, scalar_prefetch = 0 : i64, scratch_operands = 1 : i64, tpu.core_type = #tpu.core_type<tc>, window_params = [{transform_indices = @transform_0, window_bounds = array<i64: 1, 64, 256>}, {pipeline_mode = #tpu.pipeline_mode<synchronous>, transform_indices = @transform_1, window_bounds = array<i64: 1, 256, 128>}, {pipeline_mode = #tpu.pipeline_mode<synchronous>, transform_indices = @transform_2, window_bounds = array<i64: 1, 128>}, {transform_indices = @transform_3, window_bounds = array<i64: 64, 128>}]} {
    %c0 = arith.constant 0 : index
    %c0_0 = arith.constant 0 : index
    %c0_1 = arith.constant 0 : index
    %0 = vector.load %arg1[%c0, %c0_0, %c0_1] : memref<1x64x256xbf16, #tpu.memory_space<vmem>>, vector<1x64x256xbf16>
    %1 = vector.shape_cast %0 : vector<1x64x256xbf16> to vector<64x256xbf16>
    %c0_2 = arith.constant 0 : index
    %c0_3 = arith.constant 0 : index
    %c0_4 = arith.constant 0 : index
    %2 = vector.load %arg2[%c0_2, %c0_3, %c0_4] : memref<1x256x128xbf16, #tpu.memory_space<vmem>>, vector<1x256x128xbf16>
    %3 = vector.shape_cast %2 : vector<1x256x128xbf16> to vector<256x128xbf16>
    %cst = arith.constant dense<0.000000e+00> : vector<64x128xf32>
    %4 = tpu.matmul %1, %3, %cst {dimension_numbers = #tpu.dot_dimension_numbers<[1], [0], [0], [1], [0, 0, 1, 1], [], []>} : vector<64x256xbf16>, vector<256x128xbf16>, vector<64x128xf32> -> vector<64x128xf32>
    %c0_5 = arith.constant 0 : index
    %c0_6 = arith.constant 0 : index
    %5 = vector.load %arg5[%c0_5, %c0_6] : memref<64x128xf32, #tpu.memory_space<vmem>>, vector<64x128xf32>
    tpu.vector_store %arg5[%c0_5, %c0_6], %4 {strides = array<i32>} : memref<64x128xf32, #tpu.memory_space<vmem>>, vector<64x128xf32>,
    %c0_7 = arith.constant 0 : index
    %c0_8 = arith.constant 0 : index
    %6 = vector.load %arg5[%c0_7, %c0_8] : memref<64x128xf32, #tpu.memory_space<vmem>>, vector<64x128xf32>
    %c0_9 = arith.constant 0 : index
    %c0_10 = arith.constant 0 : index
    %7 = vector.load %arg3[%c0_9, %c0_10] : memref<1x128xf32, #tpu.memory_space<vmem>>, vector<1x128xf32>
    %8 = vector.broadcast %7 : vector<1x128xf32> to vector<64x128xf32>
    %9 = arith.addf %6, %8 : vector<64x128xf32>
    %cst_11 = arith.constant 0.000000e+00 : f32
    %10 = vector.broadcast %cst_11 : f32 to vector<64x128xf32>
    %11 = arith.maximumf %9, %10 : vector<64x128xf32>
    %12 = arith.truncf %11 : vector<64x128xf32> to vector<64x128xbf16>
    %c0_12 = arith.constant 0 : index
    %c0_13 = arith.constant 0 : index
    %13 = vector.load %arg4[%c0_12, %c0_13] : memref<64x128xbf16, #tpu.memory_space<vmem>>, vector<64x128xbf16>
    tpu.vector_store %arg4[%c0_12, %c0_13], %12 {strides = array<i32>} : memref<64x128xbf16, #tpu.memory_space<vmem>>, vector<64x128xbf16>,
    return
  }
  func.func @transform_0(%arg0: i32) -> (i32, i32, i32) {
    %c0_i32 = arith.constant 0 : i32
    %c0_i32_0 = arith.constant 0 : i32
    %c0_i32_1 = arith.constant 0 : i32
    return %c0_i32, %arg0, %c0_i32_0 : i32, i32, i32
  }
  func.func @transform_1(%arg0: i32) -> (i32, i32, i32) {
    %c0_i32 = arith.constant 0 : i32
    %c0_i32_0 = arith.constant 0 : i32
    %c0_i32_1 = arith.constant 0 : i32
    %c0_i32_2 = arith.constant 0 : i32
    return %c0_i32, %c0_i32_0, %c0_i32_1 : i32, i32, i32
  }
  func.func @transform_2(%arg0: i32) -> (i32, i32) {
    %c0_i32 = arith.constant 0 : i32
    %c0_i32_0 = arith.constant 0 : i32
    %c0_i32_1 = arith.constant 0 : i32
    return %c0_i32, %c0_i32_0 : i32, i32
  }
  func.func @transform_3(%arg0: i32) -> (i32, i32) {
    %c0_i32 = arith.constant 0 : i32
    %c0_i32_0 = arith.constant 0 : i32
    return %arg0, %c0_i32 : i32, i32
  }
}

</mosaic_0001>

<llo_original>
// kernel: tpu_custom_call.1
$region0: #{tpu_custom_call.1}
  #allocation0 [shape = 'u32[]', space=smem, size = 0x4, offset = 0x4, fixed_abs, tag = 'smem constant byte address 0x4 - core index']
  #allocation1 [shape = 'u32[72,128]{1,0:T(1,128)}', space=vmem, size = 0x9000, scoped, tag = 'internal scratch']
  #allocation2 [shape = 'f32[64,128]{1,0:T(8,128)}', space=vmem, size = 0x8000, scoped, tag = 'scratch operand']
  %s0 = inlined_call_operand.hbm [shape: bf16[1,128,256], index: 0, kind: input, shape index: {}]
  %s1 = inlined_call_operand.hbm [shape: bf16[1,256,128], index: 1, kind: input, shape index: {}]
  %s2 = inlined_call_operand.vmem [shape: f32[1,128], index: 2, kind: input, shape index: {}]
  %s3 = inlined_call_operand.hbm [shape: bf16[128,128], index: 3, kind: output, shape index: {}]
  %s4 = sld [smem:[#allocation0]]
  $region53: #{tpu_custom_call.1} parent=0
    _
  %s6 = ssub.s32 1, %s4
  %s7 = scalar_select 0, %s6, %s4
  $region1: #{tpu_custom_call.1} parent=0
    #allocation3 [shape = 'u8[65536]{0}', space=vmem, size = 0x10000, scoped, tag = 'input window, operand 0']
    #allocation4 [shape = 's32[2]{0}', space=sflag, size = 0x8, scoped, tag = 'scoped memory for tpu_custom_call.1']
    #allocation5 [shape = 's32[2]{0}', space=sflag, size = 0x8, scoped, tag = 'scoped memory for tpu_custom_call.1']
    #allocation6 [shape = 'u8[65536]{0}', space=vmem, size = 0x10000, scoped, tag = 'input window, operand 1, single buffered']
    #allocation7 [shape = 's32[1]{0}', space=sflag, size = 0x4, scoped, tag = 'scoped memory for tpu_custom_call.1']
    #allocation8 [shape = 'u8[32768]{0}', space=vmem, size = 0x8000, scoped, tag = 'output window, operand 0']
    %8 = vsyncpa [#allocation4], 0
    %s9 = scalar_lea.sflag [#allocation4], 1
    %10 = vsyncpa %s9, 0
    %11 = vsyncpa [#allocation7], 0
    %12 = vsyncpa [#allocation5], 0
    %s13 = scalar_lea.sflag [#allocation5], 1
    %14 = vsyncpa %s13, 0
    loop: start=0, step=1, limit=4
    $region2: #{tpu_custom_call.1} parent=1 // loop_pre_header
      _
    $region3: #{tpu_custom_call.1} parent=1 // loop_header
      %s16 = sphi 0, %s20
      %p17 = scmp.ge.s32.totalorder %s16, 4
      %s26 = sphi 0, %s28
      %s29 = sphi 0, %s26
      %s30 = sphi 0, %s29
      %s46 = sphi 0, %s30
      %s50 = sphi 0, %s50
      %s52 = sphi 0, %s50
      %s53 = sphi 0, %s52
      %s67 = sphi 0, %s53
      %s71 = sphi 0, %s71
      %s73 = sphi 0, %s71
      %s74 = sphi 0, %s73
      %s88 = sphi 0, %s74
      %s94 = sphi 0, %s96
      %s97 = sphi 0, %s94
      %s98 = sphi 0, %s97
      %s114 = sphi 0, %s98
    $region4: #{tpu_custom_call.1} parent=1 // loop_header_branch
      %19 = sbr.rel (%p17) target = $region8
    $region5: #{tpu_custom_call.1} parent=1 // loop_body
      %s21 = ssub.s32 %s16, 1
      %s22 = ssub.s32 %s16, 2
      %s23 = sadd.s32 %s16, 1
      %s24 = ssub.s32 %s16, %s23
      %p25 = scmp.eq.s32.totalorder %s24, 0
      %s27 = sadd.s32 %s26, 1
      %s28 = scalar_select %p25, %s26, %s27
      %p31 = pneg %p25
      %p32 = scmp.eq.s32.totalorder %s16, 1
      %p33 = por %p31, %p32
      %p34 = scmp.ne.s32.totalorder %s26, %s29
      %p35 = scmp.eq.s32.totalorder %s16, 0
      %p36 = por %p34, %p35
      %p37 = scmp.ne.s32.totalorder %s26, %s29
      %p38 = scmp.eq.s32.totalorder %s21, 1
      %p39 = por %p37, %p38
      %p40 = scmp.ne.s32.totalorder %s29, %s30
      %p41 = scmp.eq.s32.totalorder %s21, 0
      %p42 = por %p40, %p41
      %p43 = scmp.ne.s32.totalorder %s29, %s30
      %p44 = scmp.eq.s32.totalorder %s22, 1
      %p45 = por %p43, %p44
      %p47 = scmp.ne.s32.totalorder %s30, %s46
      %p48 = scmp.eq.s32.totalorder %s22, 0
      %p49 = por %p47, %p48
      %s51 = sadd.s32 %s50, 1
      %p54 = scmp.eq.s32.totalorder %s16, 1
      %p55 = scmp.ne.s32.totalorder %s50, %s52
      %p56 = scmp.eq.s32.totalorder %s16, 0
      %p57 = por %p55, %p56
      %p58 = scmp.ne.s32.totalorder %s50, %s52
      %p59 = scmp.eq.s32.totalorder %s21, 1
      %p60 = por %p58, %p59
      %p61 = scmp.ne.s32.totalorder %s52, %s53
      %p62 = scmp.eq.s32.totalorder %s21, 0
      %p63 = por %p61, %p62
      %p64 = scmp.ne.s32.totalorder %s52, %s53
      %p65 = scmp.eq.s32.totalorder %s22, 1
      %p66 = por %p64, %p65
      %p68 = scmp.ne.s32.totalorder %s53, %s67
      %p69 = scmp.eq.s32.totalorder %s22, 0
      %p70 = por %p68, %p69
      %s72 = sadd.s32 %s71, 1
      %p75 = scmp.eq.s32.totalorder %s16, 1
      %p76 = scmp.ne.s32.totalorder %s71, %s73
      %p77 = scmp.eq.s32.totalorder %s16, 0
      %p78 = por %p76, %p77
      %p79 = scmp.ne.s32.totalorder %s71, %s73
      %p80 = scmp.eq.s32.totalorder %s21, 1
      %p81 = por %p79, %p80
      %p82 = scmp.ne.s32.totalorder %s73, %s74
      %p83 = scmp.eq.s32.totalorder %s21, 0
      %p84 = por %p82, %p83
      %p85 = scmp.ne.s32.totalorder %s73, %s74
      %p86 = scmp.eq.s32.totalorder %s22, 1
      %p87 = por %p85, %p86
      %p89 = scmp.ne.s32.totalorder %s74, %s88
      %p90 = scmp.eq.s32.totalorder %s22, 0
      %p91 = por %p89, %p90
      %s92 = ssub.s32 %s16, %s23
      %p93 = scmp.eq.s32.totalorder %s92, 0
      %s95 = sadd.s32 %s94, 1
      %s96 = scalar_select %p93, %s94, %s95
      %p99 = pneg %p93
      %p100 = scmp.eq.s32.totalorder %s16, 1
      %p101 = por %p99, %p100
      %p102 = scmp.ne.s32.totalorder %s94, %s97
      %p103 = scmp.eq.s32.totalorder %s16, 0
      %p104 = por %p102, %p103
      %p105 = scmp.ne.s32.totalorder %s94, %s97
      %p106 = scmp.eq.s32.totalorder %s21, 1
      %p107 = por %p105, %p106
      %p108 = scmp.ne.s32.totalorder %s97, %s98
      %p109 = scmp.eq.s32.totalorder %s21, 0
      %p110 = por %p108, %p109
      %p111 = scmp.ne.s32.totalorder %s97, %s98
      %p112 = scmp.eq.s32.totalorder %s22, 1
      %p113 = por %p111, %p112
      %p115 = scmp.ne.s32.totalorder %s98, %s114
      %p116 = scmp.eq.s32.totalorder %s22, 0
      %p117 = por %p115, %p116
      %p118 = scmp.le.s32.totalorder 1, %s16
      %p119 = scmp.lt.s32.totalorder %s16, 3
      %p120 = pnand %p118, %p119
      %p121 = pneg %p120
      // Predicated region
      $region9: #{tpu_custom_call.1} parent=5 // pred_check
        _
      $region10: #{tpu_custom_call.1} parent=5 // pred_check_branch
        %123 = sbr.rel (%p120) target = $region12
      $region11: #{tpu_custom_call.1} parent=5 // pred_region
        %s124 = ssub.s32 %s16, 1
        // Predicated region
        $region13: #{tpu_custom_call.1} parent=11 // pred_check
          %p125 = pneg %p63
        $region14: #{tpu_custom_call.1} parent=11 // pred_check_branch
          %127 = sbr.rel (%p125) target = $region16
        $region15: #{tpu_custom_call.1} parent=11 // pred_region
          %129 = vsyncadd [#allocation7], 0
          %s130 = sshll.u32 %s1, 4
          %s131 = int_to_ptr.hbm [resolvable:$true] %s130
          %s132 = sshll.u32 [#allocation6], 4
          %s133 = int_to_ptr.vmem [resolvable:$true] %s132
          %138 = dma.hbm_to_vmem [thread:$0]  %s131, 2048, %s133, [#allocation7], 64, 64, 4
        $region16: #{tpu_custom_call.1} parent=11 // pred_fallthru
          _
        // Predicated region
        $region17: #{tpu_custom_call.1} parent=11 // pred_check
          %p139 = pneg %p84
        $region18: #{tpu_custom_call.1} parent=11 // pred_check_branch
          %141 = sbr.rel (%p139) target = $region20
        $region19: #{tpu_custom_call.1} parent=11 // pred_region
          _
        $region20: #{tpu_custom_call.1} parent=11 // pred_fallthru
          _
      $region12: #{tpu_custom_call.1} parent=5 // pred_fallthru
        _
      %p142 = scmp.lt.s32.totalorder %s16, 2
      // Predicated region
      $region21: #{tpu_custom_call.1} parent=5 // pred_check
        %p143 = pneg %p142
      $region22: #{tpu_custom_call.1} parent=5 // pred_check_branch
        %145 = sbr.rel (%p143) target = $region24
      $region23: #{tpu_custom_call.1} parent=5 // pred_region
        // Predicated region
        $region25: #{tpu_custom_call.1} parent=23 // pred_check
          %p146 = pneg %p36
        $region26: #{tpu_custom_call.1} parent=23 // pred_check_branch
          %148 = sbr.rel (%p146) target = $region28
        $region27: #{tpu_custom_call.1} parent=23 // pred_region
          %s149 = sand.u32 %s26, 1
          %s150 = scalar_lea.sflag [#allocation4], %s149
          %s151 = sand.u32 %s26, 1
          %s152 = smul.addr %s151, 64
          %s153 = scalar_lea.vmem [#allocation3], %s152
          %s154 = smul.u32 8, %s16
          %156 = vsyncadd %s150, 0
          %s157 = smul.addr %s154, 2
          %s158 = smul.addr %s157, 4
          %s159 = scalar_lea.hbm %s0, %s158
          %s160 = sshll.u32 %s159, 4
          %s161 = int_to_ptr.hbm [resolvable:$true] %s160
          %s162 = sshll.u32 %s153, 4
          %s163 = int_to_ptr.vmem [resolvable:$true] %s162
          %168 = dma.hbm_to_vmem [thread:$0]  %s161, 1024, %s163, %s150, 128, 128, 8
        $region28: #{tpu_custom_call.1} parent=23 // pred_fallthru
          _
      $region24: #{tpu_custom_call.1} parent=5 // pred_fallthru
        _
      %p169 = scmp.le.s32.totalorder 1, %s16
      %p170 = scmp.lt.s32.totalorder %s16, 3
      %p171 = pnand %p169, %p170
      %p172 = pneg %p171
      // Predicated region
      $region29: #{tpu_custom_call.1} parent=5 // pred_check
        _
      $region30: #{tpu_custom_call.1} parent=5 // pred_check_branch
        %174 = sbr.rel (%p171) target = $region32
      $region31: #{tpu_custom_call.1} parent=5 // pred_region
        %s175 = ssub.s32 %s16, 1
        %s176 = sand.u32 %s29, 1
        %s177 = scalar_lea.sflag [#allocation4], %s176
        %s178 = sand.u32 %s29, 1
        %s179 = smul.addr %s178, 64
        %s180 = scalar_lea.vmem [#allocation3], %s179
        // Predicated region
        $region33: #{tpu_custom_call.1} parent=31 // pred_check
          %p181 = pneg %p42
        $region34: #{tpu_custom_call.1} parent=31 // pred_check_branch
          %183 = sbr.rel (%p181) target = $region36
        $region35: #{tpu_custom_call.1} parent=31 // pred_region
          %185 = dma.done %s177, 1024
        $region36: #{tpu_custom_call.1} parent=31 // pred_fallthru
          _
        // Predicated region
        $region37: #{tpu_custom_call.1} parent=31 // pred_check
          %p186 = pneg %p63
        $region38: #{tpu_custom_call.1} parent=31 // pred_check_branch
          %188 = sbr.rel (%p186) target = $region40
        $region39: #{tpu_custom_call.1} parent=31 // pred_region
          %190 = dma.done [#allocation7], 2048
        $region40: #{tpu_custom_call.1} parent=31 // pred_fallthru
          _
        %s191 = sand.u32 %s29, 1
        %s192 = scalar_lea.sflag [#allocation4], %s191
        %s193 = sand.u32 %s29, 1
        %s194 = smul.addr %s193, 64
        %s195 = scalar_lea.vmem [#allocation3], %s194
        %p196 = pneg %p42
        %p197 = pneg %p39
        %p198 = pneg %p63
        %p199 = pneg %p60
        %p200 = pneg %p84
        %p201 = pneg %p81
        %p202 = pneg %p110
        %p203 = pneg %p107
        %s204 = sand.u32 %s97, 1
        %s205 = scalar_lea.sflag [#allocation5], %s204
        %s206 = sand.u32 %s97, 1
        %s207 = smul.addr %s206, 32
        %s208 = scalar_lea.vmem [#allocation8], %s207
        %s209 = smul.u32 8, %s21
        %s210 = smul.u32 8, %s21
        %v211 = vld [vmem:[%s180] sm:$0xff]
        %v212 = vld [vmem:[%s180 + $0x8] sm:$0xff]
        %v213 = vld [vmem:[%s180 + $0x10] sm:$0xff]
        %v214 = vld [vmem:[%s180 + $0x18] sm:$0xff]
        %v215 = vld [vmem:[%s180 + $0x20] sm:$0xff]
        %v216 = vld [vmem:[%s180 + $0x28] sm:$0xff]
        %v217 = vld [vmem:[%s180 + $0x30] sm:$0xff]
        %v218 = vld [vmem:[%s180 + $0x38] sm:$0xff]
        %v219 = vld [vmem:[#allocation6] sm:$0xf]
        %v220 = vld [vmem:[#allocation6 + $0x4] sm:$0xf]
        %v221 = vld [vmem:[#allocation6 + $0x8] sm:$0xf]
        %v222 = vld [vmem:[#allocation6 + $0xc] sm:$0xf]
        %v223 = vld [vmem:[#allocation6 + $0x10] sm:$0xf]
        %v224 = vld [vmem:[#allocation6 + $0x14] sm:$0xf]
        %v225 = vld [vmem:[#allocation6 + $0x18] sm:$0xf]
        %v226 = vld [vmem:[#allocation6 + $0x1c] sm:$0xf]
        %v227 = vld [vmem:[#allocation6 + $0x20] sm:$0xf]
        %v228 = vld [vmem:[#allocation6 + $0x24] sm:$0xf]
        %v229 = vld [vmem:[#allocation6 + $0x28] sm:$0xf]
        %v230 = vld [vmem:[#allocation6 + $0x2c] sm:$0xf]
        %v231 = vld [vmem:[#allocation6 + $0x30] sm:$0xf]
        %v232 = vld [vmem:[#allocation6 + $0x34] sm:$0xf]
        %v233 = vld [vmem:[#allocation6 + $0x38] sm:$0xf]
        %v234 = vld [vmem:[#allocation6 + $0x3c] sm:$0xf]
        %v235 = vld [vmem:[#allocation6 + $0x40] sm:$0xf]
        %v236 = vld [vmem:[#allocation6 + $0x44] sm:$0xf]
        %v237 = vld [vmem:[#allocation6 + $0x48] sm:$0xf]
        %v238 = vld [vmem:[#allocation6 + $0x4c] sm:$0xf]
        %v239 = vld [vmem:[#allocation6 + $0x50] sm:$0xf]
        %v240 = vld [vmem:[#allocation6 + $0x54] sm:$0xf]
        %v241 = vld [vmem:[#allocation6 + $0x58] sm:$0xf]
        %v242 = vld [vmem:[#allocation6 + $0x5c] sm:$0xf]
        %v243 = vld [vmem:[#allocation6 + $0x60] sm:$0xf]
        %v244 = vld [vmem:[#allocation6 + $0x64] sm:$0xf]
        %v245 = vld [vmem:[#allocation6 + $0x68] sm:$0xf]
        %v246 = vld [vmem:[#allocation6 + $0x6c] sm:$0xf]
        %v247 = vld [vmem:[#allocation6 + $0x70] sm:$0xf]
        %v248 = vld [vmem:[#allocation6 + $0x74] sm:$0xf]
        %v249 = vld [vmem:[#allocation6 + $0x78] sm:$0xf]
        %v250 = vld [vmem:[#allocation6 + $0x7c] sm:$0xf]
        %v259 = vunpack.c.l.b16 %v211
        %v260 = vunpack.c.h.b16 %v211
        %v261 = vunpack.c.l.b16 %v212
        %v262 = vunpack.c.h.b16 %v212
        %v263 = vunpack.c.l.b16 %v213
        %v264 = vunpack.c.h.b16 %v213
        %v265 = vunpack.c.l.b16 %v214
        %v266 = vunpack.c.h.b16 %v214
        %v267 = vunpack.c.l.b16 %v215
        %v268 = vunpack.c.h.b16 %v215
        %v269 = vunpack.c.l.b16 %v216
        %v270 = vunpack.c.h.b16 %v216
        %v271 = vunpack.c.l.b16 %v217
        %v272 = vunpack.c.h.b16 %v217
        %v273 = vunpack.c.l.b16 %v218
        %v274 = vunpack.c.h.b16 %v218
        %v275 = vpack.c.b16 %v261, %v259
        %v276 = vpack.c.b16 %v262, %v260
        %v277 = vpack.c.b16 %v265, %v263
        %v278 = vpack.c.b16 %v266, %v264
        %v279 = vpack.c.b16 %v269, %v267
        %v280 = vpack.c.b16 %v270, %v268
        %v281 = vpack.c.b16 %v273, %v271
        %v282 = vpack.c.b16 %v274, %v272
        %v323 = vunpack.c.l.b16 %v219
        %v324 = vunpack.c.l.b16 %v220
        %v325 = vunpack.c.l.b16 %v221
        %v326 = vunpack.c.l.b16 %v222
        %v327 = vunpack.c.l.b16 %v223
        %v328 = vunpack.c.l.b16 %v224
        %v329 = vunpack.c.l.b16 %v225
        %v330 = vunpack.c.l.b16 %v226
        %v331 = vunpack.c.l.b16 %v227
        %v332 = vunpack.c.l.b16 %v228
        %v333 = vunpack.c.l.b16 %v229
        %v334 = vunpack.c.l.b16 %v230
        %v335 = vunpack.c.l.b16 %v231
        %v336 = vunpack.c.l.b16 %v232
        %v337 = vunpack.c.l.b16 %v233
        %v338 = vunpack.c.l.b16 %v234
        %v339 = vunpack.c.l.b16 %v235
        %v340 = vunpack.c.l.b16 %v236
        %v341 = vunpack.c.l.b16 %v237
        %v342 = vunpack.c.l.b16 %v238
        %v343 = vunpack.c.l.b16 %v239
        %v344 = vunpack.c.l.b16 %v240
        %v345 = vunpack.c.l.b16 %v241
        %v346 = vunpack.c.l.b16 %v242
        %v347 = vunpack.c.l.b16 %v243
        %v348 = vunpack.c.l.b16 %v244
        %v349 = vunpack.c.l.b16 %v245
        %v350 = vunpack.c.l.b16 %v246
        %v351 = vunpack.c.l.b16 %v247
        %v352 = vunpack.c.l.b16 %v248
        %v353 = vunpack.c.l.b16 %v249
        %v354 = vunpack.c.l.b16 %v250
        %v355 = vpack.c.b16 %v324, %v323
        %v356 = vpack.c.b16 %v326, %v325
        %v357 = vpack.c.b16 %v328, %v327
        %v358 = vpack.c.b16 %v330, %v329
        %v359 = vpack.c.b16 %v332, %v331
        %v360 = vpack.c.b16 %v334, %v333
        %v361 = vpack.c.b16 %v336, %v335
        %v362 = vpack.c.b16 %v338, %v337
        %v363 = vpack.c.b16 %v340, %v339
        %v364 = vpack.c.b16 %v342, %v341
        %v365 = vpack.c.b16 %v344, %v343
        %v366 = vpack.c.b16 %v346, %v345
        %v367 = vpack.c.b16 %v348, %v347
        %v368 = vpack.c.b16 %v350, %v349
        %v369 = vpack.c.b16 %v352, %v351
        %v370 = vpack.c.b16 %v354, %v353
        %387 = vmatpush.bf16.msra.mxu0 %v362
        %388 = vmatpush.bf16.msra.mxu0 %v361
        %389 = vmatpush.bf16.msra.mxu0 %v360
        %390 = vmatpush.bf16.msra.mxu0 %v359
        %391 = vmatpush.bf16.msra.mxu0 %v358
        %392 = vmatpush.bf16.msra.mxu0 %v357
        %393 = vmatpush.bf16.msra.mxu0 %v356
        %394 = vmatpush.bf16.msra.mxu0 %v355
        %395 = vmatmul.bf16.gmra.mxu0 %v275
        %v396 = vpop.f32.mrf.mxu0
        %v397 = vadd.f32 0.0, %v396
        %v398 = vpop.f32.mrf.mxu0
        %v399 = vadd.f32 0.0, %v398
        %400 = vmatmul.bf16.gmra.mxu0 %v277
        %v401 = vpop.f32.mrf.mxu0
        %v402 = vadd.f32 0.0, %v401
        %v403 = vpop.f32.mrf.mxu0
        %v404 = vadd.f32 0.0, %v403
        %405 = vmatmul.bf16.gmra.mxu0 %v279
        %v406 = vpop.f32.mrf.mxu0
        %v407 = vadd.f32 0.0, %v406
        %v408 = vpop.f32.mrf.mxu0
        %v409 = vadd.f32 0.0, %v408
        %410 = vmatmul.bf16.gmra.mxu0 %v281
        %v411 = vpop.f32.mrf.mxu0
        %v412 = vadd.f32 0.0, %v411
        %v413 = vpop.f32.mrf.mxu0
        %v414 = vadd.f32 0.0, %v413
        %415 = vdwg.mxu0
        %416 = vmatpush.bf16.msra.mxu0 %v370
        %417 = vmatpush.bf16.msra.mxu0 %v369
        %418 = vmatpush.bf16.msra.mxu0 %v368
        %419 = vmatpush.bf16.msra.mxu0 %v367
        %420 = vmatpush.bf16.msra.mxu0 %v366
        %421 = vmatpush.bf16.msra.mxu0 %v365
        %422 = vmatpush.bf16.msra.mxu0 %v364
        %423 = vmatpush.bf16.msra.mxu0 %v363
        %424 = vmatmul.bf16.gmra.mxu0 %v276
        %v425 = vpop.f32.mrf.mxu0
        %v426 = vadd.f32 %v397, %v425
        %v427 = vpop.f32.mrf.mxu0
        %v428 = vadd.f32 %v399, %v427
        %429 = vmatmul.bf16.gmra.mxu0 %v278
        %v430 = vpop.f32.mrf.mxu0
        %v431 = vadd.f32 %v402, %v430
        %v432 = vpop.f32.mrf.mxu0
        %v433 = vadd.f32 %v404, %v432
        %434 = vmatmul.bf16.gmra.mxu0 %v280
        %v435 = vpop.f32.mrf.mxu0
        %v436 = vadd.f32 %v407, %v435
        %v437 = vpop.f32.mrf.mxu0
        %v438 = vadd.f32 %v409, %v437
        %439 = vmatmul.bf16.gmra.mxu0 %v282
        %v440 = vpop.f32.mrf.mxu0
        %v441 = vadd.f32 %v412, %v440
        %v442 = vpop.f32.mrf.mxu0
        %v443 = vadd.f32 %v414, %v442
        %444 = vdwg.mxu0
        %445 = vst [vmem:[#allocation2] sm:$0xff] %v426
        %446 = vst [vmem:[#allocation2 + $0x8] sm:$0xff] %v428
        %447 = vst [vmem:[#allocation2 + $0x10] sm:$0xff] %v431
        %448 = vst [vmem:[#allocation2 + $0x18] sm:$0xff] %v433
        %449 = vst [vmem:[#allocation2 + $0x20] sm:$0xff] %v436
        %450 = vst [vmem:[#allocation2 + $0x28] sm:$0xff] %v438
        %451 = vst [vmem:[#allocation2 + $0x30] sm:$0xff] %v441
        %452 = vst [vmem:[#allocation2 + $0x38] sm:$0xff] %v443
        %v453 = vld [vmem:[#allocation2] sm:$0xff]
        %v454 = vld [vmem:[#allocation2 + $0x8] sm:$0xff]
        %v455 = vld [vmem:[#allocation2 + $0x10] sm:$0xff]
        %v456 = vld [vmem:[#allocation2 + $0x18] sm:$0xff]
        %v457 = vld [vmem:[#allocation2 + $0x20] sm:$0xff]
        %v458 = vld [vmem:[#allocation2 + $0x28] sm:$0xff]
        %v459 = vld [vmem:[#allocation2 + $0x30] sm:$0xff]
        %v460 = vld [vmem:[#allocation2 + $0x38] sm:$0xff]
        %v461 = vld [vmem:[%s2] sm:$0x1]
        %v463 = vperm.slane %v461, 0
        %v465 = vadd.f32 %v453, %v463
        %v466 = vadd.f32 %v454, %v463
        %v467 = vadd.f32 %v455, %v463
        %v468 = vadd.f32 %v456, %v463
        %v469 = vadd.f32 %v457, %v463
        %v470 = vadd.f32 %v458, %v463
        %v471 = vadd.f32 %v459, %v463
        %v472 = vadd.f32 %v460, %v463
        %v473 = vmax.f32 %v465, 0.0
        %v474 = vmax.f32 %v466, 0.0
        %v475 = vmax.f32 %v467, 0.0
        %v476 = vmax.f32 %v468, 0.0
        %v477 = vmax.f32 %v469, 0.0
        %v478 = vmax.f32 %v470, 0.0
        %v479 = vmax.f32 %v471, 0.0
        %v480 = vmax.f32 %v472, 0.0
        %v481 = vpack.c.bf16 %v473, %v473
        %v482 = vpack.c.bf16 %v474, %v474
        %v483 = vpack.c.bf16 %v475, %v475
        %v484 = vpack.c.bf16 %v476, %v476
        %v485 = vpack.c.bf16 %v477, %v477
        %v486 = vpack.c.bf16 %v478, %v478
        %v487 = vpack.c.bf16 %v479, %v479
        %v488 = vpack.c.bf16 %v480, %v480
        %489 = vst [vmem:[%s208] sm:$0xf] %v481
        %490 = vst [vmem:[%s208 + $0x4] sm:$0xf] %v482
        %491 = vst [vmem:[%s208 + $0x8] sm:$0xf] %v483
        %492 = vst [vmem:[%s208 + $0xc] sm:$0xf] %v484
        %493 = vst [vmem:[%s208 + $0x10] sm:$0xf] %v485
        %494 = vst [vmem:[%s208 + $0x14] sm:$0xf] %v486
        %495 = vst [vmem:[%s208 + $0x18] sm:$0xf] %v487
        %496 = vst [vmem:[%s208 + $0x1c] sm:$0xf] %v488
        %s497 = sand.u32 %s97, 1
        %s498 = scalar_lea.sflag [#allocation5], %s497
        %s499 = sand.u32 %s97, 1
        %s500 = smul.addr %s499, 32
        %s501 = scalar_lea.vmem [#allocation8], %s500
        // Predicated region
        $region41: #{tpu_custom_call.1} parent=31 // pred_check
          %p502 = pneg %p107
        $region42: #{tpu_custom_call.1} parent=31 // pred_check_branch
          %504 = sbr.rel (%p502) target = $region44
        $region43: #{tpu_custom_call.1} parent=31 // pred_region
          %s505 = smul.u32 8, %s21
          %507 = vsyncadd %s498, 0
          %s508 = smul.addr %s505, 4
          %s509 = scalar_lea.hbm %s3, %s508
          %s510 = sshll.u32 %s501, 4
          %s511 = int_to_ptr.vmem [resolvable:$true] %s510
          %s512 = sshll.u32 %s509, 4
          %s513 = int_to_ptr.hbm [resolvable:$true] %s512
          %518 = dma.vmem_to_hbm [thread:$0]  %s511, 512, %s513, %s498, 64, 64, 4
        $region44: #{tpu_custom_call.1} parent=31 // pred_fallthru
          _
      $region32: #{tpu_custom_call.1} parent=5 // pred_fallthru
        _
      %p519 = scmp.le.s32.totalorder 2, %s16
      // Predicated region
      $region45: #{tpu_custom_call.1} parent=5 // pred_check
        %p520 = pneg %p519
      $region46: #{tpu_custom_call.1} parent=5 // pred_check_branch
        %522 = sbr.rel (%p520) target = $region48
      $region47: #{tpu_custom_call.1} parent=5 // pred_region
        %s523 = ssub.s32 %s16, 2
        // Predicated region
        $region49: #{tpu_custom_call.1} parent=47 // pred_check
          %p524 = pneg %p113
        $region50: #{tpu_custom_call.1} parent=47 // pred_check_branch
          %526 = sbr.rel (%p524) target = $region52
        $region51: #{tpu_custom_call.1} parent=47 // pred_region
          %s527 = sand.u32 %s98, 1
          %s528 = scalar_lea.sflag [#allocation5], %s527
          %s529 = sand.u32 %s98, 1
          %s530 = smul.addr %s529, 32
          %s531 = scalar_lea.vmem [#allocation8], %s530
          %533 = dma.done %s528, 512
        $region52: #{tpu_custom_call.1} parent=47 // pred_fallthru
          _
      $region48: #{tpu_custom_call.1} parent=5 // pred_fallthru
        _
    $region6: #{tpu_custom_call.1} parent=1 // loop_footer
      %s20 = sadd.s32 1, %s16
    $region7: #{tpu_custom_call.1} parent=1 // loop_footer_branch
      %15 = sbr.rel target = $region3
    $region8: #{tpu_custom_call.1} parent=1 // loop_exit
      _
    %534 = vsyncpa [#allocation4], 1
    %s535 = scalar_lea.sflag [#allocation4], 1
    %536 = vsyncpa %s535, 1
    %537 = vsyncpa [#allocation7], 1
    %538 = vsyncpa [#allocation5], 1
    %s539 = scalar_lea.sflag [#allocation5], 1
    %540 = vsyncpa %s539, 1

</llo_original>
